<compile_context>
chip_gen: v5e
topology: v5e:2x2
jax: 0.10.0
libtpu: 0.0.40
codegen_flags: <defaults>
</compile_context>

<pallas_src>
import jax
import jax.numpy as jnp
from jax.experimental import pallas as pl
from jax.experimental.pallas import tpu as pltpu

H_IN = 128      # hidden size coming out of the (omitted) graph encoder
FEAT = 64       # feature_dim of the projection head
BN_EPS = 1e-5   # nn.BatchNorm1d default eps

# rows of the packed [VEC_ROWS, 64] "vecs" slab
_R_B2, _R_G1, _R_BE1, _R_G2, _R_BE2, _R_B3, _R_A1, _R_A2, _R_A3 = range(9)
VEC_ROWS = 9


def _bn_train(h, gamma, beta):
    # nn.BatchNorm1d in training mode: batch mean, biased batch variance.
    mean = jnp.mean(h, axis=0, keepdims=True)
    var = jnp.mean((h - mean) ** 2, axis=0, keepdims=True)
    return (h - mean) * jax.lax.rsqrt(var + BN_EPS) * gamma + beta


def _prelu(h, a):
    # F.prelu; `a` may be a scalar or a lane-replicated [64] vector.
    return jnp.where(h >= 0.0, h, a * h)


def _make_kernel(t_total, t_tile):
    """Build the kernel closed over the static T extent / tile size."""
    needs_mask = (t_total % t_tile) != 0

    def kernel(x_ref, w1ws_ref, b1bs_ref, w23_ref, vecs_ref, out_ref, acc_ref):
        t = pl.program_id(0)

        # ---- init the f32 accumulator on the first grid step ----
        @pl.when(t == 0)
        def _():
            acc_ref[...] = jnp.zeros_like(acc_ref)

        # ---- accumulate the time-sum for this tile ----
        x = x_ref[...].astype(jnp.float32)              # [t_tile, B, 128]
        if needs_mask:
            # Edge tile: out-of-bounds rows hold undefined data -> mask to 0.
            rows = t * t_tile + jax.lax.broadcasted_iota(jnp.int32, x.shape, 0)
            x = jnp.where(rows < t_total, x, 0.0)
        acc_ref[...] += jnp.sum(x, axis=0)              # [B, 128]

        # ---- epilogue: full MLP head on the last grid step only ----
        @pl.when(t == pl.num_programs(0) - 1)
        def _():
            g = acc_ref[...]                            # [B, 128]
            vecs = vecs_ref[...]                        # [VEC_ROWS, 64]

            # fused (w1 | w_shortcut) -> one lane-dense 128x128 MXU matmul
            hs = jnp.dot(g, w1ws_ref[...],
                         preferred_element_type=jnp.float32) + b1bs_ref[...]
            h = hs[:, :FEAT]        # fcs branch pre-activation
            sc = hs[:, FEAT:]       # linear shortcut branch

            # fcs: Linear -> BN -> PReLU -> Linear -> BN -> PReLU -> Linear -> PReLU
            h = _bn_train(h, vecs[_R_G1], vecs[_R_BE1])
            h = _prelu(h, vecs[_R_A1])

            h = jnp.dot(h, w23_ref[0],
                        preferred_element_type=jnp.float32) + vecs[_R_B2]
            h = _bn_train(h, vecs[_R_G2], vecs[_R_BE2])
            h = _prelu(h, vecs[_R_A2])

            h = jnp.dot(h, w23_ref[1],
                        preferred_element_type=jnp.float32) + vecs[_R_B3]
            h = _prelu(h, vecs[_R_A3])

            out_ref[...] = (h + sc).astype(out_ref.dtype)

    return kernel


def pack_params(p):
    """Pack the 14 head tensors into 4 VMEM operands."""
    w1ws = jnp.concatenate([p["w1"], p["ws"]], axis=1)          # [128, 128]
    b1bs = jnp.concatenate([p["b1"], p["bs"]], axis=1)          # [1, 128]
    w23 = jnp.stack([p["w2"], p["w3"]], axis=0)                 # [2, 64, 64]

    a = p["alphas"][0]
    rows = [None] * VEC_ROWS
    rows[_R_B2] = p["b2"][0]
    rows[_R_G1] = p["gamma1"][0]
    rows[_R_BE1] = p["beta1"][0]
    rows[_R_G2] = p["gamma2"][0]
    rows[_R_BE2] = p["beta2"][0]
    rows[_R_B3] = p["b3"][0]
    rows[_R_A1] = jnp.full((FEAT,), a[0], jnp.float32)          # PReLU slopes,
    rows[_R_A2] = jnp.full((FEAT,), a[1], jnp.float32)          # lane-replicated
    rows[_R_A3] = jnp.full((FEAT,), a[2], jnp.float32)
    vecs = jnp.stack(rows, axis=0)                              # [VEC_ROWS, 64]
    return w1ws, b1bs, w23, vecs


def gsimclr_forward(local_emb, params, *, t_tile=None):
    """local_emb: [max_t, B, 128] (f32 or bf16) -> global_enc: [B, 64] f32."""
    T, B, H = local_emb.shape
    assert H == H_IN

    itemsize = jnp.dtype(local_emb.dtype).itemsize
    if t_tile is None:
        # ~4 MiB per input tile; double-buffered (2x) this stays well under the
        # v5e 16 MiB default scoped VMEM and far under v6e/v7x budgets.
        bytes_per_t_row = B * H_IN * itemsize
        t_tile = max(1, (4 * 1024 * 1024) // max(1, bytes_per_t_row))
    t_tile = int(min(t_tile, T))
    nt = pl.cdiv(T, t_tile)

    w1ws, b1bs, w23, vecs = pack_params(params)

    def const(n):
        return lambda t: (0,) * n

    grid_spec = pltpu.PrefetchScalarGridSpec(
        num_scalar_prefetch=0,
        grid=(nt,),
        in_specs=[
            pl.BlockSpec((t_tile, B, H_IN), lambda t: (t, 0, 0)),   # streamed input
            pl.BlockSpec((H_IN, H_IN), const(2)),                   # w1 | ws (resident)
            pl.BlockSpec((1, H_IN), const(2)),                      # b1 | bs
            pl.BlockSpec((2, FEAT, FEAT), const(3)),                # w2, w3
            pl.BlockSpec((VEC_ROWS, FEAT), const(2)),               # biases/BN/PReLU slab
        ],
        out_specs=pl.BlockSpec((B, FEAT), const(2)),
        scratch_shapes=[pltpu.VMEM((B, H_IN), jnp.float32)],        # f32 time-sum acc
    )

    flops = B * (2 * H_IN * H_IN + 2 * (2 * FEAT * FEAT)) + T * B * H_IN
    bytes_accessed = (T * B * H_IN * itemsize
                      + (H_IN * H_IN + H_IN + 2 * FEAT * FEAT + VEC_ROWS * FEAT) * 4
                      + B * FEAT * 4)

    return pl.pallas_call(
        _make_kernel(T, t_tile),
        out_shape=jax.ShapeDtypeStruct((B, FEAT), jnp.float32),
        grid_spec=grid_spec,
        compiler_params=pltpu.CompilerParams(
            dimension_semantics=("arbitrary",)),   # accumulator carried across T
        cost_estimate=pl.CostEstimate(
            flops=flops, transcendentals=0, bytes_accessed=bytes_accessed),
    )(local_emb, w1ws, b1bs, w23, vecs)


def make_params(key):
    ks = jax.random.split(key, 8)

    def lin(k, fan_in, fan_out):
        bound = 1.0 / jnp.sqrt(fan_in)
        kw, kb = jax.random.split(k)
        w = jax.random.uniform(kw, (fan_in, fan_out), jnp.float32, -bound, bound)
        b = jax.random.uniform(kb, (1, fan_out), jnp.float32, -bound, bound)
        return w, b

    w1, b1 = lin(ks[0], H_IN, FEAT)
    w2, b2 = lin(ks[1], FEAT, FEAT)
    w3, b3 = lin(ks[2], FEAT, FEAT)
    ws, bs = lin(ks[3], H_IN, FEAT)
    return dict(
        w1=w1, b1=b1,
        gamma1=jnp.ones((1, FEAT), jnp.float32), beta1=jnp.zeros((1, FEAT), jnp.float32),
        w2=w2, b2=b2,
        gamma2=jnp.ones((1, FEAT), jnp.float32), beta2=jnp.zeros((1, FEAT), jnp.float32),
        w3=w3, b3=b3,
        ws=ws, bs=bs,
        alphas=jnp.full((1, 3), 0.25, jnp.float32),   # nn.PReLU default init
    )


def reference_forward(local_emb, p):
    g = jnp.sum(local_emb.astype(jnp.float32), axis=0)
    h = g @ p["w1"] + p["b1"]
    h = _bn_train(h, p["gamma1"], p["beta1"])
    h = _prelu(h, p["alphas"][0, 0])
    h = h @ p["w2"] + p["b2"]
    h = _bn_train(h, p["gamma2"], p["beta2"])
    h = _prelu(h, p["alphas"][0, 1])
    h = h @ p["w3"] + p["b3"]
    h = _prelu(h, p["alphas"][0, 2])
    return h + (g @ p["ws"] + p["bs"])


if __name__ == "__main__":
    key = jax.random.PRNGKey(0)
    k_x, k_p = jax.random.split(key)

    # Small shapes; max_t=21 with t_tile=8 exercises the multi-step accumulator
    # pipeline AND the masked edge tile (21 % 8 != 0).
    max_t, batch = 21, 8
    local_emb = jax.random.normal(k_x, (max_t, batch, H_IN), jnp.float32)
    params = make_params(k_p)

    out = gsimclr_forward(local_emb, params, t_tile=8)
    out = jax.block_until_ready(out)

    ref = reference_forward(local_emb, params)
    assert out.shape == (batch, FEAT)
    assert jnp.allclose(out, ref, rtol=1e-4, atol=1e-3), float(jnp.max(jnp.abs(out - ref)))

    print("KERNEL_OK")
</pallas_src>

<mosaic_0001>
module attributes {stable_mosaic.version = 11 : i64} {
  func.func @kernel(%arg0: i32, %arg1: memref<8x8x128xf32, #tpu.memory_space<vmem>>, %arg2: memref<128x128xf32, #tpu.memory_space<vmem>>, %arg3: memref<1x128xf32, #tpu.memory_space<vmem>>, %arg4: memref<2x64x64xf32, #tpu.memory_space<vmem>>, %arg5: memref<9x64xf32, #tpu.memory_space<vmem>>, %arg6: memref<8x64xf32, #tpu.memory_space<vmem>>, %arg7: memref<8x128xf32, #tpu.memory_space<vmem>>) attributes {dimension_semantics = [#tpu.dimension_semantics<arbitrary>], iteration_bounds = array<i64: 3>, scalar_prefetch = 0 : i64, scratch_operands = 1 : i64, tpu.core_type = #tpu.core_type<tc>, window_params = [{transform_indices = @transform_0, window_bounds = array<i64: 8, 8, 128>}, {pipeline_mode = #tpu.pipeline_mode<synchronous>, transform_indices = @transform_1, window_bounds = array<i64: 128, 128>}, {pipeline_mode = #tpu.pipeline_mode<synchronous>, transform_indices = @transform_2, window_bounds = array<i64: 1, 128>}, {pipeline_mode = #tpu.pipeline_mode<synchronous>, transform_indices = @transform_3, window_bounds = array<i64: 2, 64, 64>}, {pipeline_mode = #tpu.pipeline_mode<synchronous>, transform_indices = @transform_4, window_bounds = array<i64: 9, 64>}, {pipeline_mode = #tpu.pipeline_mode<synchronous>, transform_indices = @transform_5, window_bounds = array<i64: 8, 64>}]} {
    %c0_i32 = arith.constant 0 : i32
    %0 = arith.cmpi eq, %arg0, %c0_i32 : i32
    %1 = arith.extui %0 : i1 to i32
    %c0_i32_0 = arith.constant 0 : i32
    %2 = arith.cmpi ne, %1, %c0_i32_0 : i32
    scf.if %2 {
      %cst_9 = arith.constant 0.000000e+00 : f32
      %19 = vector.broadcast %cst_9 : f32 to vector<8x128xf32>
      %c0_10 = arith.constant 0 : index
      %c0_11 = arith.constant 0 : index
      %20 = vector.load %arg7[%c0_10, %c0_11] : memref<8x128xf32, #tpu.memory_space<vmem>>, vector<8x128xf32>
      tpu.vector_store %arg7[%c0_10, %c0_11], %19 {strides = array<i32>} : memref<8x128xf32, #tpu.memory_space<vmem>>, vector<8x128xf32>,
    } else {
    }
    %c0 = arith.constant 0 : index
    %c0_1 = arith.constant 0 : index
    %c0_2 = arith.constant 0 : index
    %3 = vector.load %arg1[%c0, %c0_1, %c0_2] : memref<8x8x128xf32, #tpu.memory_space<vmem>>, vector<8x8x128xf32>
    %c8_i32 = arith.constant 8 : i32
    %4 = arith.muli %arg0, %c8_i32 : i32
    %5 = tpu.iota {dimensions = array<i32: 0>} : vector<8x8x128xi32>
    %6 = vector.broadcast %4 : i32 to vector<8x8x128xi32>
    %7 = arith.addi %6, %5 : vector<8x8x128xi32>
    %c21_i32 = arith.constant 21 : i32
    %8 = vector.broadcast %c21_i32 : i32 to vector<8x8x128xi32>
    %9 = arith.cmpi slt, %7, %8 : vector<8x8x128xi32>
    %cst = arith.constant 0.000000e+00 : f32
    %10 = vector.broadcast %cst : f32 to vector<8x8x128xf32>
    %11 = arith.select %9, %3, %10 : vector<8x8x128xi1>, vector<8x8x128xf32>
    %c0_3 = arith.constant 0 : index
    %c0_4 = arith.constant 0 : index
    %12 = vector.load %arg7[%c0_3, %c0_4] : memref<8x128xf32, #tpu.memory_space<vmem>>, vector<8x128xf32>
    %cst_5 = arith.constant dense<0.000000e+00> : vector<8x128xf32>
    %13 = vector.multi_reduction <add>, %11, %cst_5 [0] : vector<8x8x128xf32> to vector<8x128xf32>
    %14 = arith.addf %12, %13 : vector<8x128xf32>
    %c0_6 = arith.constant 0 : index
    %c0_7 = arith.constant 0 : index
    %15 = vector.load %arg7[%c0_6, %c0_7] : memref<8x128xf32, #tpu.memory_space<vmem>>, vector<8x128xf32>
    tpu.vector_store %arg7[%c0_6, %c0_7], %14 {strides = array<i32>} : memref<8x128xf32, #tpu.memory_space<vmem>>, vector<8x128xf32>,
    %c2_i32 = arith.constant 2 : i32
    %16 = arith.cmpi eq, %arg0, %c2_i32 : i32
    %17 = arith.extui %16 : i1 to i32
    %c0_i32_8 = arith.constant 0 : i32
    %18 = arith.cmpi ne, %17, %c0_i32_8 : i32
    scf.if %18 {
      %c0_9 = arith.constant 0 : index
      %c0_10 = arith.constant 0 : index
      %19 = vector.load %arg7[%c0_9, %c0_10] : memref<8x128xf32, #tpu.memory_space<vmem>>, vector<8x128xf32>
      %c0_11 = arith.constant 0 : index
      %c0_12 = arith.constant 0 : index
      %20 = vector.load %arg5[%c0_11, %c0_12] : memref<9x64xf32, #tpu.memory_space<vmem>>, vector<9x64xf32>
      %c0_13 = arith.constant 0 : index
      %c0_14 = arith.constant 0 : index
      %21 = vector.load %arg2[%c0_13, %c0_14] : memref<128x128xf32, #tpu.memory_space<vmem>>, vector<128x128xf32>
      %cst_15 = arith.constant dense<0.000000e+00> : vector<8x128xf32>
      %22 = tpu.matmul %19, %21, %cst_15 {dimension_numbers = #tpu.dot_dimension_numbers<[1], [0], [0], [1], [0, 0, 1, 1], [], []>} : vector<8x128xf32>, vector<128x128xf32>, vector<8x128xf32> -> vector<8x128xf32>
      %c0_16 = arith.constant 0 : index
      %c0_17 = arith.constant 0 : index
      %23 = vector.load %arg3[%c0_16, %c0_17] : memref<1x128xf32, #tpu.memory_space<vmem>>, vector<1x128xf32>
      %24 = vector.broadcast %23 : vector<1x128xf32> to vector<8x128xf32>
      %25 = arith.addf %22, %24 : vector<8x128xf32>
      %26 = vector.extract_strided_slice %25 {offsets = [0, 0], sizes = [8, 64], strides = [1, 1]} : vector<8x128xf32> to vector<8x64xf32>
      %27 = vector.extract_strided_slice %25 {offsets = [0, 64], sizes = [8, 64], strides = [1, 1]} : vector<8x128xf32> to vector<8x64xf32>
      %28 = vector.extract_strided_slice %20 {offsets = [1, 0], sizes = [1, 64], strides = [1, 1]} : vector<9x64xf32> to vector<1x64xf32>
      %29 = vector.shape_cast %28 : vector<1x64xf32> to vector<64xf32>
      %30 = vector.extract_strided_slice %20 {offsets = [2, 0], sizes = [1, 64], strides = [1, 1]} : vector<9x64xf32> to vector<1x64xf32>
      %31 = vector.shape_cast %30 : vector<1x64xf32> to vector<64xf32>
      %cst_18 = arith.constant dense<0.000000e+00> : vector<64xf32>
      %32 = vector.multi_reduction <add>, %26, %cst_18 [0] : vector<8x64xf32> to vector<64xf32>
      %33 = vector.shape_cast %32 : vector<64xf32> to vector<1x64xf32>
      %cst_19 = arith.constant 8.000000e+00 : f32
      %34 = vector.broadcast %cst_19 : f32 to vector<1x64xf32>
      %35 = arith.divf %33, %34 : vector<1x64xf32>
      %36 = vector.broadcast %35 : vector<1x64xf32> to vector<8x64xf32>
      %37 = arith.subf %26, %36 : vector<8x64xf32>
      %38 = arith.mulf %37, %37 : vector<8x64xf32>
      %cst_20 = arith.constant dense<0.000000e+00> : vector<64xf32>
      %39 = vector.multi_reduction <add>, %38, %cst_20 [0] : vector<8x64xf32> to vector<64xf32>
      %40 = vector.shape_cast %39 : vector<64xf32> to vector<1x64xf32>
      %cst_21 = arith.constant 8.000000e+00 : f32
      %41 = vector.broadcast %cst_21 : f32 to vector<1x64xf32>
      %42 = arith.divf %40, %41 : vector<1x64xf32>
      %43 = vector.broadcast %35 : vector<1x64xf32> to vector<8x64xf32>
      %44 = arith.subf %26, %43 : vector<8x64xf32>
      %cst_22 = arith.constant 9.99999974E-6 : f32
      %45 = vector.broadcast %cst_22 : f32 to vector<1x64xf32>
      %46 = arith.addf %42, %45 : vector<1x64xf32>
      %47 = math.rsqrt %46 : vector<1x64xf32>
      %48 = vector.broadcast %47 : vector<1x64xf32> to vector<8x64xf32>
      %49 = arith.mulf %44, %48 : vector<8x64xf32>
      %50 = vector.shape_cast %29 : vector<64xf32> to vector<1x64xf32>
      %51 = vector.broadcast %50 : vector<1x64xf32> to vector<8x64xf32>
      %52 = arith.mulf %49, %51 : vector<8x64xf32>
      %53 = vector.shape_cast %31 : vector<64xf32> to vector<1x64xf32>
      %54 = vector.broadcast %53 : vector<1x64xf32> to vector<8x64xf32>
      %55 = arith.addf %52, %54 : vector<8x64xf32>
      %56 = vector.extract_strided_slice %20 {offsets = [6, 0], sizes = [1, 64], strides = [1, 1]} : vector<9x64xf32> to vector<1x64xf32>
      %57 = vector.shape_cast %56 : vector<1x64xf32> to vector<64xf32>
      %cst_23 = arith.constant 0.000000e+00 : f32
      %58 = vector.broadcast %cst_23 : f32 to vector<8x64xf32>
      %59 = arith.cmpf oge, %55, %58 : vector<8x64xf32>
      %60 = vector.shape_cast %57 : vector<64xf32> to vector<1x64xf32>
      %61 = vector.broadcast %60 : vector<1x64xf32> to vector<8x64xf32>
      %62 = arith.mulf %61, %55 : vector<8x64xf32>
      %63 = arith.select %59, %55, %62 : vector<8x64xi1>, vector<8x64xf32>
      %c0_24 = arith.constant 0 : index
      %c0_25 = arith.constant 0 : index
      %c0_26 = arith.constant 0 : index
      %64 = vector.load %arg4[%c0_24, %c0_25, %c0_26] : memref<2x64x64xf32, #tpu.memory_space<vmem>>, vector<1x64x64xf32>
      %65 = vector.shape_cast %64 : vector<1x64x64xf32> to vector<64x64xf32>
      %cst_27 = arith.constant dense<0.000000e+00> : vector<8x64xf32>
      %66 = tpu.matmul %63, %65, %cst_27 {dimension_numbers = #tpu.dot_dimension_numbers<[1], [0], [0], [1], [0, 0, 1, 1], [], []>} : vector<8x64xf32>, vector<64x64xf32>, vector<8x64xf32> -> vector<8x64xf32>
      %67 = vector.extract_strided_slice %20 {offsets = [0, 0], sizes = [1, 64], strides = [1, 1]} : vector<9x64xf32> to vector<1x64xf32>
      %68 = vector.shape_cast %67 : vector<1x64xf32> to vector<64xf32>
      %69 = vector.shape_cast %68 : vector<64xf32> to vector<1x64xf32>
      %70 = vector.broadcast %69 : vector<1x64xf32> to vector<8x64xf32>
      %71 = arith.addf %66, %70 : vector<8x64xf32>
      %72 = vector.extract_strided_slice %20 {offsets = [3, 0], sizes = [1, 64], strides = [1, 1]} : vector<9x64xf32> to vector<1x64xf32>
      %73 = vector.shape_cast %72 : vector<1x64xf32> to vector<64xf32>
      %74 = vector.extract_strided_slice %20 {offsets = [4, 0], sizes = [1, 64], strides = [1, 1]} : vector<9x64xf32> to vector<1x64xf32>
      %75 = vector.shape_cast %74 : vector<1x64xf32> to vector<64xf32>
      %cst_28 = arith.constant dense<0.000000e+00> : vector<64xf32>
      %76 = vector.multi_reduction <add>, %71, %cst_28 [0] : vector<8x64xf32> to vector<64xf32>
      %77 = vector.shape_cast %76 : vector<64xf32> to vector<1x64xf32>
      %cst_29 = arith.constant 8.000000e+00 : f32
      %78 = vector.broadcast %cst_29 : f32 to vector<1x64xf32>
      %79 = arith.divf %77, %78 : vector<1x64xf32>
      %80 = vector.broadcast %79 : vector<1x64xf32> to vector<8x64xf32>
      %81 = arith.subf %71, %80 : vector<8x64xf32>
      %82 = arith.mulf %81, %81 : vector<8x64xf32>
      %cst_30 = arith.constant dense<0.000000e+00> : vector<64xf32>
      %83 = vector.multi_reduction <add>, %82, %cst_30 [0] : vector<8x64xf32> to vector<64xf32>
      %84 = vector.shape_cast %83 : vector<64xf32> to vector<1x64xf32>
      %cst_31 = arith.constant 8.000000e+00 : f32
      %85 = vector.broadcast %cst_31 : f32 to vector<1x64xf32>
      %86 = arith.divf %84, %85 : vector<1x64xf32>
      %87 = vector.broadcast %79 : vector<1x64xf32> to vector<8x64xf32>
      %88 = arith.subf %71, %87 : vector<8x64xf32>
      %cst_32 = arith.constant 9.99999974E-6 : f32
      %89 = vector.broadcast %cst_32 : f32 to vector<1x64xf32>
      %90 = arith.addf %86, %89 : vector<1x64xf32>
      %91 = math.rsqrt %90 : vector<1x64xf32>
      %92 = vector.broadcast %91 : vector<1x64xf32> to vector<8x64xf32>
      %93 = arith.mulf %88, %92 : vector<8x64xf32>
      %94 = vector.shape_cast %73 : vector<64xf32> to vector<1x64xf32>
      %95 = vector.broadcast %94 : vector<1x64xf32> to vector<8x64xf32>
      %96 = arith.mulf %93, %95 : vector<8x64xf32>
      %97 = vector.shape_cast %75 : vector<64xf32> to vector<1x64xf32>
      %98 = vector.broadcast %97 : vector<1x64xf32> to vector<8x64xf32>
      %99 = arith.addf %96, %98 : vector<8x64xf32>
      %100 = vector.extract_strided_slice %20 {offsets = [7, 0], sizes = [1, 64], strides = [1, 1]} : vector<9x64xf32> to vector<1x64xf32>
      %101 = vector.shape_cast %100 : vector<1x64xf32> to vector<64xf32>
      %cst_33 = arith.constant 0.000000e+00 : f32
      %102 = vector.broadcast %cst_33 : f32 to vector<8x64xf32>
      %103 = arith.cmpf oge, %99, %102 : vector<8x64xf32>
      %104 = vector.shape_cast %101 : vector<64xf32> to vector<1x64xf32>
      %105 = vector.broadcast %104 : vector<1x64xf32> to vector<8x64xf32>
      %106 = arith.mulf %105, %99 : vector<8x64xf32>
      %107 = arith.select %103, %99, %106 : vector<8x64xi1>, vector<8x64xf32>
      %c1 = arith.constant 1 : index
      %c0_34 = arith.constant 0 : index
      %c0_35 = arith.constant 0 : index
      %108 = vector.load %arg4[%c1, %c0_34, %c0_35] : memref<2x64x64xf32, #tpu.memory_space<vmem>>, vector<1x64x64xf32>
      %109 = vector.shape_cast %108 : vector<1x64x64xf32> to vector<64x64xf32>
      %cst_36 = arith.constant dense<0.000000e+00> : vector<8x64xf32>
      %110 = tpu.matmul %107, %109, %cst_36 {dimension_numbers = #tpu.dot_dimension_numbers<[1], [0], [0], [1], [0, 0, 1, 1], [], []>} : vector<8x64xf32>, vector<64x64xf32>, vector<8x64xf32> -> vector<8x64xf32>
      %111 = vector.extract_strided_slice %20 {offsets = [5, 0], sizes = [1, 64], strides = [1, 1]} : vector<9x64xf32> to vector<1x64xf32>
      %112 = vector.shape_cast %111 : vector<1x64xf32> to vector<64xf32>
      %113 = vector.shape_cast %112 : vector<64xf32> to vector<1x64xf32>
      %114 = vector.broadcast %113 : vector<1x64xf32> to vector<8x64xf32>
      %115 = arith.addf %110, %114 : vector<8x64xf32>
      %116 = vector.extract_strided_slice %20 {offsets = [8, 0], sizes = [1, 64], strides = [1, 1]} : vector<9x64xf32> to vector<1x64xf32>
      %117 = vector.shape_cast %116 : vector<1x64xf32> to vector<64xf32>
      %cst_37 = arith.constant 0.000000e+00 : f32
      %118 = vector.broadcast %cst_37 : f32 to vector<8x64xf32>
      %119 = arith.cmpf oge, %115, %118 : vector<8x64xf32>
      %120 = vector.shape_cast %117 : vector<64xf32> to vector<1x64xf32>
      %121 = vector.broadcast %120 : vector<1x64xf32> to vector<8x64xf32>
      %122 = arith.mulf %121, %115 : vector<8x64xf32>
      %123 = arith.select %119, %115, %122 : vector<8x64xi1>, vector<8x64xf32>
      %124 = arith.addf %123, %27 : vector<8x64xf32>
      %c0_38 = arith.constant 0 : index
      %c0_39 = arith.constant 0 : index
      %125 = vector.load %arg6[%c0_38, %c0_39] : memref<8x64xf32, #tpu.memory_space<vmem>>, vector<8x64xf32>
      tpu.vector_store %arg6[%c0_38, %c0_39], %124 {strides = array<i32>} : memref<8x64xf32, #tpu.memory_space<vmem>>, vector<8x64xf32>,
    } else {
    }
    return
  }
  func.func @transform_0(%arg0: i32) -> (i32, i32, i32) {
    %c0_i32 = arith.constant 0 : i32
    %c0_i32_0 = arith.constant 0 : i32
    %c0_i32_1 = arith.constant 0 : i32
    return %arg0, %c0_i32, %c0_i32_0 : i32, i32, i32
  }
  func.func @transform_1(%arg0: i32) -> (i32, i32) {
    %c0_i32 = arith.constant 0 : i32
    %c0_i32_0 = arith.constant 0 : i32
    %c0_i32_1 = arith.constant 0 : i32
    return %c0_i32, %c0_i32_0 : i32, i32
  }
  func.func @transform_2(%arg0: i32) -> (i32, i32) {
    %c0_i32 = arith.constant 0 : i32
    %c0_i32_0 = arith.constant 0 : i32
    %c0_i32_1 = arith.constant 0 : i32
    return %c0_i32, %c0_i32_0 : i32, i32
  }
  func.func @transform_3(%arg0: i32) -> (i32, i32, i32) {
    %c0_i32 = arith.constant 0 : i32
    %c0_i32_0 = arith.constant 0 : i32
    %c0_i32_1 = arith.constant 0 : i32
    %c0_i32_2 = arith.constant 0 : i32
    return %c0_i32, %c0_i32_0, %c0_i32_1 : i32, i32, i32
  }
  func.func @transform_4(%arg0: i32) -> (i32, i32) {
    %c0_i32 = arith.constant 0 : i32
    %c0_i32_0 = arith.constant 0 : i32
    %c0_i32_1 = arith.constant 0 : i32
    return %c0_i32, %c0_i32_0 : i32, i32
  }
  func.func @transform_5(%arg0: i32) -> (i32, i32) {
    %c0_i32 = arith.constant 0 : i32
    %c0_i32_0 = arith.constant 0 : i32
    %c0_i32_1 = arith.constant 0 : i32
    return %c0_i32, %c0_i32_0 : i32, i32
  }
}

</mosaic_0001>

<llo_original>
// kernel: tpu_custom_call.1
$region0: #{tpu_custom_call.1}
  #allocation0 [shape = 'u32[]', space=smem, size = 0x4, offset = 0x4, fixed_abs, tag = 'smem constant byte address 0x4 - core index']
  #allocation1 [shape = 'u32[72,128]{1,0:T(1,128)}', space=vmem, size = 0x9000, scoped, tag = 'internal scratch']
  #allocation2 [shape = 'f32[8,128]{1,0:T(8,128)}', space=vmem, size = 0x1000, scoped, tag = 'scratch operand']
  %s0 = inlined_call_operand.hbm [shape: f32[21,8,128], index: 0, kind: input, shape index: {}]
  %s1 = inlined_call_operand.hbm [shape: f32[128,128], index: 1, kind: input, shape index: {}]
  %s2 = inlined_call_operand.vmem [shape: f32[1,128], index: 2, kind: input, shape index: {}]
  %s3 = inlined_call_operand.hbm [shape: f32[2,64,64], index: 3, kind: input, shape index: {}]
  %s4 = inlined_call_operand.hbm [shape: f32[9,64], index: 4, kind: input, shape index: {}]
  %s5 = inlined_call_operand.hbm [shape: f32[8,64], index: 5, kind: output, shape index: {}]
  %s6 = sld [smem:[#allocation0]]
  $region77: #{tpu_custom_call.1} parent=0
    _
  %s8 = ssub.s32 1, %s6
  %s9 = scalar_select 0, %s8, %s6
  $region1: #{tpu_custom_call.1} parent=0
    #allocation3 [shape = 'u8[65536]{0}', space=vmem, size = 0x10000, scoped, tag = 'input window, operand 0']
    #allocation4 [shape = 's32[2]{0}', space=sflag, size = 0x8, scoped, tag = 'scoped memory for tpu_custom_call.1']
    #allocation5 [shape = 's32[2]{0}', space=sflag, size = 0x8, scoped, tag = 'scoped memory for tpu_custom_call.1']
    #allocation6 [shape = 'u8[65536]{0}', space=vmem, size = 0x10000, scoped, tag = 'input window, operand 1, single buffered']
    #allocation7 [shape = 's32[1]{0}', space=sflag, size = 0x4, scoped, tag = 'scoped memory for tpu_custom_call.1']
    #allocation8 [shape = 'u8[65536]{0}', space=vmem, size = 0x10000, scoped, tag = 'input window, operand 3, single buffered']
    #allocation9 [shape = 'u8[8192]{0}', space=vmem, size = 0x2000, scoped, tag = 'input window, operand 4, single buffered']
    #allocation10 [shape = 's32[1]{0}', space=sflag, size = 0x4, scoped, tag = 'scoped memory for tpu_custom_call.1']
    #allocation11 [shape = 'u8[4096]{0}', space=vmem, size = 0x1000, scoped, tag = 'output window, operand 0, single buffered']
    %10 = vsyncpa [#allocation4], 0
    %s11 = scalar_lea.sflag [#allocation4], 1
    %12 = vsyncpa %s11, 0
    %13 = vsyncpa [#allocation7], 0
    %14 = vsyncpa [#allocation10], 0
    %15 = vsyncpa [#allocation5], 0
    loop: start=0, step=1, limit=5
    $region2: #{tpu_custom_call.1} parent=1 // loop_pre_header
      _
    $region3: #{tpu_custom_call.1} parent=1 // loop_header
      %s17 = sphi 0, %s21
      %p18 = scmp.ge.s32.totalorder %s17, 5
      %s27 = sphi 0, %s29
      %s30 = sphi 0, %s27
      %s31 = sphi 0, %s30
      %s47 = sphi 0, %s31
      %s51 = sphi 0, %s51
      %s53 = sphi 0, %s51
      %s54 = sphi 0, %s53
      %s68 = sphi 0, %s54
      %s72 = sphi 0, %s72
      %s74 = sphi 0, %s72
      %s75 = sphi 0, %s74
      %s89 = sphi 0, %s75
      %s93 = sphi 0, %s93
      %s95 = sphi 0, %s93
      %s96 = sphi 0, %s95
      %s110 = sphi 0, %s96
      %s114 = sphi 0, %s114
      %s116 = sphi 0, %s114
      %s117 = sphi 0, %s116
      %s131 = sphi 0, %s117
      %s135 = sphi 0, %s135
      %s137 = sphi 0, %s135
      %s138 = sphi 0, %s137
      %s152 = sphi 0, %s138
    $region4: #{tpu_custom_call.1} parent=1 // loop_header_branch
      %20 = sbr.rel (%p18) target = $region8
    $region5: #{tpu_custom_call.1} parent=1 // loop_body
      %s22 = ssub.s32 %s17, 1
      %s23 = ssub.s32 %s17, 2
      %s24 = sadd.s32 %s17, 1
      %s25 = ssub.s32 %s17, %s24
      %p26 = scmp.eq.s32.totalorder %s25, 0
      %s28 = sadd.s32 %s27, 1
      %s29 = scalar_select %p26, %s27, %s28
      %p32 = pneg %p26
      %p33 = scmp.eq.s32.totalorder %s17, 2
      %p34 = por %p32, %p33
      %p35 = scmp.ne.s32.totalorder %s27, %s30
      %p36 = scmp.eq.s32.totalorder %s17, 0
      %p37 = por %p35, %p36
      %p38 = scmp.ne.s32.totalorder %s27, %s30
      %p39 = scmp.eq.s32.totalorder %s22, 2
      %p40 = por %p38, %p39
      %p41 = scmp.ne.s32.totalorder %s30, %s31
      %p42 = scmp.eq.s32.totalorder %s22, 0
      %p43 = por %p41, %p42
      %p44 = scmp.ne.s32.totalorder %s30, %s31
      %p45 = scmp.eq.s32.totalorder %s23, 2
      %p46 = por %p44, %p45
      %p48 = scmp.ne.s32.totalorder %s31, %s47
      %p49 = scmp.eq.s32.totalorder %s23, 0
      %p50 = por %p48, %p49
      %s52 = sadd.s32 %s51, 1
      %p55 = scmp.eq.s32.totalorder %s17, 2
      %p56 = scmp.ne.s32.totalorder %s51, %s53
      %p57 = scmp.eq.s32.totalorder %s17, 0
      %p58 = por %p56, %p57
      %p59 = scmp.ne.s32.totalorder %s51, %s53
      %p60 = scmp.eq.s32.totalorder %s22, 2
      %p61 = por %p59, %p60
      %p62 = scmp.ne.s32.totalorder %s53, %s54
      %p63 = scmp.eq.s32.totalorder %s22, 0
      %p64 = por %p62, %p63
      %p65 = scmp.ne.s32.totalorder %s53, %s54
      %p66 = scmp.eq.s32.totalorder %s23, 2
      %p67 = por %p65, %p66
      %p69 = scmp.ne.s32.totalorder %s54, %s68
      %p70 = scmp.eq.s32.totalorder %s23, 0
      %p71 = por %p69, %p70
      %s73 = sadd.s32 %s72, 1
      %p76 = scmp.eq.s32.totalorder %s17, 2
      %p77 = scmp.ne.s32.totalorder %s72, %s74
      %p78 = scmp.eq.s32.totalorder %s17, 0
      %p79 = por %p77, %p78
      %p80 = scmp.ne.s32.totalorder %s72, %s74
      %p81 = scmp.eq.s32.totalorder %s22, 2
      %p82 = por %p80, %p81
      %p83 = scmp.ne.s32.totalorder %s74, %s75
      %p84 = scmp.eq.s32.totalorder %s22, 0
      %p85 = por %p83, %p84
      %p86 = scmp.ne.s32.totalorder %s74, %s75
      %p87 = scmp.eq.s32.totalorder %s23, 2
      %p88 = por %p86, %p87
      %p90 = scmp.ne.s32.totalorder %s75, %s89
      %p91 = scmp.eq.s32.totalorder %s23, 0
      %p92 = por %p90, %p91
      %s94 = sadd.s32 %s93, 1
      %p97 = scmp.eq.s32.totalorder %s17, 2
      %p98 = scmp.ne.s32.totalorder %s93, %s95
      %p99 = scmp.eq.s32.totalorder %s17, 0
      %p100 = por %p98, %p99
      %p101 = scmp.ne.s32.totalorder %s93, %s95
      %p102 = scmp.eq.s32.totalorder %s22, 2
      %p103 = por %p101, %p102
      %p104 = scmp.ne.s32.totalorder %s95, %s96
      %p105 = scmp.eq.s32.totalorder %s22, 0
      %p106 = por %p104, %p105
      %p107 = scmp.ne.s32.totalorder %s95, %s96
      %p108 = scmp.eq.s32.totalorder %s23, 2
      %p109 = por %p107, %p108
      %p111 = scmp.ne.s32.totalorder %s96, %s110
      %p112 = scmp.eq.s32.totalorder %s23, 0
      %p113 = por %p111, %p112
      %s115 = sadd.s32 %s114, 1
      %p118 = scmp.eq.s32.totalorder %s17, 2
      %p119 = scmp.ne.s32.totalorder %s114, %s116
      %p120 = scmp.eq.s32.totalorder %s17, 0
      %p121 = por %p119, %p120
      %p122 = scmp.ne.s32.totalorder %s114, %s116
      %p123 = scmp.eq.s32.totalorder %s22, 2
      %p124 = por %p122, %p123
      %p125 = scmp.ne.s32.totalorder %s116, %s117
      %p126 = scmp.eq.s32.totalorder %s22, 0
      %p127 = por %p125, %p126
      %p128 = scmp.ne.s32.totalorder %s116, %s117
      %p129 = scmp.eq.s32.totalorder %s23, 2
      %p130 = por %p128, %p129
      %p132 = scmp.ne.s32.totalorder %s117, %s131
      %p133 = scmp.eq.s32.totalorder %s23, 0
      %p134 = por %p132, %p133
      %s136 = sadd.s32 %s135, 1
      %p139 = scmp.eq.s32.totalorder %s17, 2
      %p140 = scmp.ne.s32.totalorder %s135, %s137
      %p141 = scmp.eq.s32.totalorder %s17, 0
      %p142 = por %p140, %p141
      %p143 = scmp.ne.s32.totalorder %s135, %s137
      %p144 = scmp.eq.s32.totalorder %s22, 2
      %p145 = por %p143, %p144
      %p146 = scmp.ne.s32.totalorder %s137, %s138
      %p147 = scmp.eq.s32.totalorder %s22, 0
      %p148 = por %p146, %p147
      %p149 = scmp.ne.s32.totalorder %s137, %s138
      %p150 = scmp.eq.s32.totalorder %s23, 2
      %p151 = por %p149, %p150
      %p153 = scmp.ne.s32.totalorder %s138, %s152
      %p154 = scmp.eq.s32.totalorder %s23, 0
      %p155 = por %p153, %p154
      %p156 = scmp.le.s32.totalorder 1, %s17
      %p157 = scmp.lt.s32.totalorder %s17, 4
      %p158 = pnand %p156, %p157
      %p159 = pneg %p158
      // Predicated region
      $region9: #{tpu_custom_call.1} parent=5 // pred_check
        _
      $region10: #{tpu_custom_call.1} parent=5 // pred_check_branch
        %161 = sbr.rel (%p158) target = $region12
      $region11: #{tpu_custom_call.1} parent=5 // pred_region
        %s162 = ssub.s32 %s17, 1
        // Predicated region
        $region13: #{tpu_custom_call.1} parent=11 // pred_check
          %p163 = pneg %p64
        $region14: #{tpu_custom_call.1} parent=11 // pred_check_branch
          %165 = sbr.rel (%p163) target = $region16
        $region15: #{tpu_custom_call.1} parent=11 // pred_region
          %167 = vsyncadd [#allocation7], 0
          %s168 = sshll.u32 %s1, 4
          %s169 = int_to_ptr.hbm [resolvable:$true] %s168
          %s170 = sshll.u32 [#allocation6], 4
          %s171 = int_to_ptr.vmem [resolvable:$true] %s170
          %176 = dma.hbm_to_vmem [thread:$0]  %s169, 2048, %s171, [#allocation7], 128, 128, 8
        $region16: #{tpu_custom_call.1} parent=11 // pred_fallthru
          _
        // Predicated region
        $region17: #{tpu_custom_call.1} parent=11 // pred_check
          %p177 = pneg %p85
        $region18: #{tpu_custom_call.1} parent=11 // pred_check_branch
          %179 = sbr.rel (%p177) target = $region20
        $region19: #{tpu_custom_call.1} parent=11 // pred_region
          _
        $region20: #{tpu_custom_call.1} parent=11 // pred_fallthru
          _
        // Predicated region
        $region21: #{tpu_custom_call.1} parent=11 // pred_check
          %p180 = pneg %p106
        $region22: #{tpu_custom_call.1} parent=11 // pred_check_branch
          %182 = sbr.rel (%p180) target = $region24
        $region23: #{tpu_custom_call.1} parent=11 // pred_region
          %184 = vsyncadd [#allocation7], 0
          %s185 = sshll.u32 %s3, 4
          %s186 = int_to_ptr.hbm [resolvable:$true] %s185
          %s187 = sshll.u32 [#allocation8], 4
          %s188 = int_to_ptr.vmem [resolvable:$true] %s187
          %193 = dma.hbm_to_vmem [thread:$0]  %s186, 2048, %s188, [#allocation7], 128, 128, 8
        $region24: #{tpu_custom_call.1} parent=11 // pred_fallthru
          _
        // Predicated region
        $region25: #{tpu_custom_call.1} parent=11 // pred_check
          %p194 = pneg %p127
        $region26: #{tpu_custom_call.1} parent=11 // pred_check_branch
          %196 = sbr.rel (%p194) target = $region28
        $region27: #{tpu_custom_call.1} parent=11 // pred_region
          %198 = vsyncadd [#allocation10], 0
          %s199 = sshll.u32 %s4, 4
          %s200 = int_to_ptr.hbm [resolvable:$true] %s199
          %s201 = sshll.u32 [#allocation9], 4
          %s202 = int_to_ptr.vmem [resolvable:$true] %s201
          %207 = dma.hbm_to_vmem [thread:$0]  %s200, 256, %s202, [#allocation10], 128, 128, 8
        $region28: #{tpu_custom_call.1} parent=11 // pred_fallthru
          _
      $region12: #{tpu_custom_call.1} parent=5 // pred_fallthru
        _
      %p208 = scmp.lt.s32.totalorder %s17, 3
      // Predicated region
      $region29: #{tpu_custom_call.1} parent=5 // pred_check
        %p209 = pneg %p208
      $region30: #{tpu_custom_call.1} parent=5 // pred_check_branch
        %211 = sbr.rel (%p209) target = $region32
      $region31: #{tpu_custom_call.1} parent=5 // pred_region
        // Predicated region
        $region33: #{tpu_custom_call.1} parent=31 // pred_check
          %p212 = pneg %p37
        $region34: #{tpu_custom_call.1} parent=31 // pred_check_branch
          %214 = sbr.rel (%p212) target = $region36
        $region35: #{tpu_custom_call.1} parent=31 // pred_region
          %s215 = sand.u32 %s27, 1
          %s216 = scalar_lea.sflag [#allocation4], %s215
          %s217 = sand.u32 %s27, 1
          %s218 = smul.addr %s217, 64
          %s219 = scalar_lea.vmem [#allocation3], %s218
          %s220 = smul.u32 8, %s17
          %s221 = ssub.s32 21, %s220
          %p222 = scmp.lt.s32.totalorder %s221, 8
          %s223 = scalar_select %p222, %s221, 8
          %s224 = smul.u32 8, %s223
          %s225 = ssub.s32 64, %s224
          %s226 = sshll.u32 %s225, 4
          %227 = vsyncadd %s216, %s226
          %p228 = scmp.ne.s32.totalorder 0, %s224
          %s229 = smul.addr %s220, 8
          %s230 = scalar_lea.hbm %s0, %s229
          %s231 = smul.u32 8, %s223
          %s232 = sshll.u32 %s230, 4
          %s233 = int_to_ptr.hbm [resolvable:$true] %s232
          %s234 = sshll.u32 %s219, 4
          %s235 = int_to_ptr.vmem [resolvable:$true] %s234
          %s236 = sshll.u32 %s231, 4
          %240 = dma.hbm_to_vmem [thread:$0]  (%p228), %s233, %s236, %s235, %s216, 128, 128, 8
        $region36: #{tpu_custom_call.1} parent=31 // pred_fallthru
          _
      $region32: #{tpu_custom_call.1} parent=5 // pred_fallthru
        _
      %p241 = scmp.le.s32.totalorder 1, %s17
      %p242 = scmp.lt.s32.totalorder %s17, 4
      %p243 = pnand %p241, %p242
      %p244 = pneg %p243
      // Predicated region
      $region37: #{tpu_custom_call.1} parent=5 // pred_check
        _
      $region38: #{tpu_custom_call.1} parent=5 // pred_check_branch
        %246 = sbr.rel (%p243) target = $region40
      $region39: #{tpu_custom_call.1} parent=5 // pred_region
        %s247 = ssub.s32 %s17, 1
        %s248 = sand.u32 %s30, 1
        %s249 = scalar_lea.sflag [#allocation4], %s248
        %s250 = sand.u32 %s30, 1
        %s251 = smul.addr %s250, 64
        %s252 = scalar_lea.vmem [#allocation3], %s251
        // Predicated region
        $region41: #{tpu_custom_call.1} parent=39 // pred_check
          %p253 = pneg %p43
        $region42: #{tpu_custom_call.1} parent=39 // pred_check_branch
          %255 = sbr.rel (%p253) target = $region44
        $region43: #{tpu_custom_call.1} parent=39 // pred_region
          %257 = dma.done %s249, 1024
        $region44: #{tpu_custom_call.1} parent=39 // pred_fallthru
          _
        // Predicated region
        $region45: #{tpu_custom_call.1} parent=39 // pred_check
          %p258 = pneg %p64
        $region46: #{tpu_custom_call.1} parent=39 // pred_check_branch
          %260 = sbr.rel (%p258) target = $region48
        $region47: #{tpu_custom_call.1} parent=39 // pred_region
          %262 = dma.done [#allocation7], 2048
        $region48: #{tpu_custom_call.1} parent=39 // pred_fallthru
          _
        // Predicated region
        $region49: #{tpu_custom_call.1} parent=39 // pred_check
          %p263 = pneg %p106
        $region50: #{tpu_custom_call.1} parent=39 // pred_check_branch
          %265 = sbr.rel (%p263) target = $region52
        $region51: #{tpu_custom_call.1} parent=39 // pred_region
          %267 = dma.done [#allocation7], 2048
        $region52: #{tpu_custom_call.1} parent=39 // pred_fallthru
          _
        // Predicated region
        $region53: #{tpu_custom_call.1} parent=39 // pred_check
          %p268 = pneg %p127
        $region54: #{tpu_custom_call.1} parent=39 // pred_check_branch
          %270 = sbr.rel (%p268) target = $region56
        $region55: #{tpu_custom_call.1} parent=39 // pred_region
          %272 = dma.done [#allocation10], 256
        $region56: #{tpu_custom_call.1} parent=39 // pred_fallthru
          _
        %s273 = sand.u32 %s30, 1
        %s274 = scalar_lea.sflag [#allocation4], %s273
        %s275 = sand.u32 %s30, 1
        %s276 = smul.addr %s275, 64
        %s277 = scalar_lea.vmem [#allocation3], %s276
        %p278 = pneg %p43
        %p279 = pneg %p40
        %p280 = pneg %p64
        %p281 = pneg %p61
        %p282 = pneg %p85
        %p283 = pneg %p82
        %p284 = pneg %p106
        %p285 = pneg %p103
        %p286 = pneg %p127
        %p287 = pneg %p124
        %p288 = pneg %p148
        %p289 = pneg %p145
        %s290 = smul.u32 8, %s22
        %s291 = ssub.s32 21, %s290
        %p292 = scmp.lt.s32.totalorder %s291, 8
        %s293 = scalar_select %p292, %s291, 8
        %s294 = smul.u32 8, %s293
        %p295 = scmp.eq.s32.totalorder %s22, 0
        // Predicated region
        $region57: #{tpu_custom_call.1} parent=39 // pred_check
          %p296 = pneg %p295
        $region58: #{tpu_custom_call.1} parent=39 // pred_check_branch
          %298 = sbr.rel (%p296) target = $region60
        $region59: #{tpu_custom_call.1} parent=39 // pred_region
          %299 = vst [vmem:[#allocation2] sm:$0xff] 0.0
        $region60: #{tpu_custom_call.1} parent=39 // pred_fallthru
          _
        %v300 = vld [vmem:[%s252] sm:$0xff]
        %v301 = vld [vmem:[%s252 + $0x8] sm:$0xff]
        %v302 = vld [vmem:[%s252 + $0x10] sm:$0xff]
        %v303 = vld [vmem:[%s252 + $0x18] sm:$0xff]
        %v304 = vld [vmem:[%s252 + $0x20] sm:$0xff]
        %v305 = vld [vmem:[%s252 + $0x28] sm:$0xff]
        %v306 = vld [vmem:[%s252 + $0x30] sm:$0xff]
        %v307 = vld [vmem:[%s252 + $0x38] sm:$0xff]
        %s308 = smul.u32 %s22, 8
        %v309 = vstv %s308
        %v310 = vadd.s32 %v309, 1
        %v311 = vadd.s32 %v309, 2
        %v312 = vadd.s32 %v309, 3
        %v313 = vadd.s32 %v309, 4
        %v314 = vadd.s32 %v309, 5
        %v315 = vadd.s32 %v309, 6
        %v316 = vadd.s32 %v309, 7
        %vm317 = vcmp.lt.s32.totalorder %v309, 21
        %vm318 = vcmp.lt.s32.totalorder %v310, 21
        %vm319 = vcmp.lt.s32.totalorder %v311, 21
        %vm320 = vcmp.lt.s32.totalorder %v312, 21
        %vm321 = vcmp.lt.s32.totalorder %v313, 21
        %vm322 = vcmp.lt.s32.totalorder %v314, 21
        %vm323 = vcmp.lt.s32.totalorder %v315, 21
        %vm324 = vcmp.lt.s32.totalorder %v316, 21
        %v325 = vsel %vm317, %v300, 0.0
        %v326 = vsel %vm318, %v301, 0.0
        %v327 = vsel %vm319, %v302, 0.0
        %v328 = vsel %vm320, %v303, 0.0
        %v329 = vsel %vm321, %v304, 0.0
        %v330 = vsel %vm322, %v305, 0.0
        %v331 = vsel %vm323, %v306, 0.0
        %v332 = vsel %vm324, %v307, 0.0
        %v333 = vld [vmem:[#allocation2] sm:$0xff]
        %v334 = vadd.f32 %v325, %v326
        %v335 = vadd.f32 %v334, %v327
        %v336 = vadd.f32 %v335, %v328
        %v337 = vadd.f32 %v336, %v329
        %v338 = vadd.f32 %v337, %v330
        %v339 = vadd.f32 %v338, %v331
        %v340 = vadd.f32 %v339, %v332
        %v341 = vadd.f32 %v333, %v340
        %342 = vst [vmem:[#allocation2] sm:$0xff] %v341
        %p343 = scmp.eq.s32.totalorder %s22, 2
        // Predicated region
        $region61: #{tpu_custom_call.1} parent=39 // pred_check
          %p344 = pneg %p343
        $region62: #{tpu_custom_call.1} parent=39 // pred_check_branch
          %346 = sbr.rel (%p344) target = $region64
        $region63: #{tpu_custom_call.1} parent=39 // pred_region
          %v347 = vld [vmem:[#allocation2] sm:$0xff]
          %v348 = vld [vmem:[#allocation9] sm:$0xff]
          %v349 = vld [vmem:[#allocation9 + $0x8] sm:$0x1]
          %v350 = vld [vmem:[#allocation6] sm:$0xff]
          %v351 = vld [vmem:[#allocation6 + $0x8] sm:$0xff]
          %v352 = vld [vmem:[#allocation6 + $0x10] sm:$0xff]
          %v353 = vld [vmem:[#allocation6 + $0x18] sm:$0xff]
          %v354 = vld [vmem:[#allocation6 + $0x20] sm:$0xff]
          %v355 = vld [vmem:[#allocation6 + $0x28] sm:$0xff]
          %v356 = vld [vmem:[#allocation6 + $0x30] sm:$0xff]
          %v357 = vld [vmem:[#allocation6 + $0x38] sm:$0xff]
          %v358 = vld [vmem:[#allocation6 + $0x40] sm:$0xff]
          %v359 = vld [vmem:[#allocation6 + $0x48] sm:$0xff]
          %v360 = vld [vmem:[#allocation6 + $0x50] sm:$0xff]
          %v361 = vld [vmem:[#allocation6 + $0x58] sm:$0xff]
          %v362 = vld [vmem:[#allocation6 + $0x60] sm:$0xff]
          %v363 = vld [vmem:[#allocation6 + $0x68] sm:$0xff]
          %v364 = vld [vmem:[#allocation6 + $0x70] sm:$0xff]
          %v365 = vld [vmem:[#allocation6 + $0x78] sm:$0xff]
          %v366 = vld [vmem:[%s2] sm:$0x1]
          %v368 = vperm.slane %v366, 0
          %370 = vmatpush.msra.mxu0 %v365
          %371 = vmatpush.msra.mxu0 %v364
          %372 = vmatpush.msra.mxu0 %v363
          %373 = vmatpush.msra.mxu0 %v362
          %374 = vmatpush.msra.mxu0 %v361
          %375 = vmatpush.msra.mxu0 %v360
          %376 = vmatpush.msra.mxu0 %v359
          %377 = vmatpush.msra.mxu0 %v358
          %378 = vmatpush.msra.mxu0 %v357
          %379 = vmatpush.msra.mxu0 %v356
          %380 = vmatpush.msra.mxu0 %v355
          %381 = vmatpush.msra.mxu0 %v354
          %382 = vmatpush.msra.mxu0 %v353
          %383 = vmatpush.msra.mxu0 %v352
          %384 = vmatpush.msra.mxu0 %v351
          %385 = vmatpush.msra.mxu0 %v350
          %386 = vmatmul.f32.gmra.mxu0 %v347
          %v387 = vpop.f32.mrf.mxu0
          %v388 = vadd.f32 %v368, %v387
          %389 = vdwg.mxu0
          %vm390 = vcmask 523264
          %v391 = vsel %vm390, %v388, 0.0
          %v392 = vrot.slane %v391, 4
          %v393 = vadd.f32 %v391, %v392
          %v394 = vrot.slane %v393, 2
          %v395 = vadd.f32 %v393, %v394
          %v396 = vrot.slane %v395, 1
          %v397 = vadd.f32 %v395, %v396
          %v398 = vrcp.pop 8.0
          %v399 = vmul.f32 8.0, %v398
          %v400 = vsub.f32 1.0, %v399
          %v401 = vmul.f32 %v398, %v400
          %v402 = vadd.f32 %v398, %v401
          %vm403 = vweird.f32 %v398
          %v404 = vsel %vm403, %v398, %v402
          %v405 = vmul.f32 %v397, %v404
          %v406 = vsub.f32 %v388, %v405
          %v407 = vmul.f32 %v406, %v406
          %v408 = vsel %vm390, %v407, 0.0
          %v409 = vrot.slane %v408, 4
          %v410 = vadd.f32 %v408, %v409
          %v411 = vrot.slane %v410, 2
          %v412 = vadd.f32 %v410, %v411
          %v413 = vrot.slane %v412, 1
          %v414 = vadd.f32 %v412, %v413
          %v415 = vmul.f32 %v414, %v404
          %v416 = vadd.f32 %v415, 1e-05
          %v417 = vrsqrt.pop %v416
          %v418 = vmul.f32 %v417, %v416
          %v419 = vmul.f32 %v418, %v417
          %v420 = vmul.f32 0.5, %v419
          %v421 = vsub.f32 1.5, %v420
          %v422 = vmul.f32 %v417, %v421
          %vm423 = vweird.f32 %v416
          %vm424 = vweird.f32 %v417
          %vm425 = vmor %vm423, %vm424
          %v426 = vsel %vm425, %v417, %v422
          %v427 = vmul.f32 %v406, %v426
          %v428 = vperm.slane %v348, 1
          %v429 = vmul.f32 %v427, %v428
          %v430 = vperm.slane %v348, 2
          %v431 = vadd.f32 %v429, %v430
          %vm432 = vcmp.ge.f32.partialorder %v431, 0.0
          %v433 = vperm.slane %v348, 6
          %v434 = vmul.f32 %v433, %v431
          %v435 = vsel %vm432, %v431, %v434
          %v436 = vld [vmem:[#allocation8] sm:$0xff]
          %v437 = vld [vmem:[#allocation8 + $0x8] sm:$0xff]
          %v438 = vld [vmem:[#allocation8 + $0x10] sm:$0xff]
          %v439 = vld [vmem:[#allocation8 + $0x18] sm:$0xff]
          %v440 = vld [vmem:[#allocation8 + $0x20] sm:$0xff]
          %v441 = vld [vmem:[#allocation8 + $0x28] sm:$0xff]
          %v442 = vld [vmem:[#allocation8 + $0x30] sm:$0xff]
          %v443 = vld [vmem:[#allocation8 + $0x38] sm:$0xff]
          %v444 = vperm.slane %v348, 0
          %v446 = vsel %vm390, %v435, 0
          %448 = vmatpush.msra.mxu0 0.0
          %449 = vmatpush.msra.mxu0 0.0
          %450 = vmatpush.msra.mxu0 0.0
          %451 = vmatpush.msra.mxu0 0.0
          %452 = vmatpush.msra.mxu0 0.0
          %453 = vmatpush.msra.mxu0 0.0
          %454 = vmatpush.msra.mxu0 0.0
          %455 = vmatpush.msra.mxu0 0.0
          %456 = vmatpush.msra.mxu0 %v443
          %457 = vmatpush.msra.mxu0 %v442
          %458 = vmatpush.msra.mxu0 %v441
          %459 = vmatpush.msra.mxu0 %v440
          %460 = vmatpush.msra.mxu0 %v439
          %461 = vmatpush.msra.mxu0 %v438
          %462 = vmatpush.msra.mxu0 %v437
          %463 = vmatpush.msra.mxu0 %v436
          %464 = vmatmul.f32.gmra.mxu0 %v446
          %v465 = vpop.f32.mrf.mxu0
          %v466 = vadd.f32 %v444, %v465
          %467 = vdwg.mxu0
          %v468 = vsel %vm390, %v466, 0.0
          %v469 = vrot.slane %v468, 4
          %v470 = vadd.f32 %v468, %v469
          %v471 = vrot.slane %v470, 2
          %v472 = vadd.f32 %v470, %v471
          %v473 = vrot.slane %v472, 1
          %v474 = vadd.f32 %v472, %v473
          %v475 = vmul.f32 %v474, %v404
          %v476 = vsub.f32 %v466, %v475
          %v477 = vmul.f32 %v476, %v476
          %v478 = vsel %vm390, %v477, 0.0
          %v479 = vrot.slane %v478, 4
          %v480 = vadd.f32 %v478, %v479
          %v481 = vrot.slane %v480, 2
          %v482 = vadd.f32 %v480, %v481
          %v483 = vrot.slane %v482, 1
          %v484 = vadd.f32 %v482, %v483
          %v485 = vmul.f32 %v484, %v404
          %v486 = vadd.f32 %v485, 1e-05
          %v487 = vrsqrt.pop %v486
          %v488 = vmul.f32 %v487, %v486
          %v489 = vmul.f32 %v488, %v487
          %v490 = vmul.f32 0.5, %v489
          %v491 = vsub.f32 1.5, %v490
          %v492 = vmul.f32 %v487, %v491
          %vm493 = vweird.f32 %v486
          %vm494 = vweird.f32 %v487
          %vm495 = vmor %vm493, %vm494
          %v496 = vsel %vm495, %v487, %v492
          %v497 = vmul.f32 %v476, %v496
          %v498 = vperm.slane %v348, 3
          %v499 = vmul.f32 %v497, %v498
          %v500 = vperm.slane %v348, 4
          %v501 = vadd.f32 %v499, %v500
          %vm502 = vcmp.ge.f32.partialorder %v501, 0.0
          %v503 = vperm.slane %v348, 7
          %v504 = vmul.f32 %v503, %v501
          %v505 = vsel %vm502, %v501, %v504
          %s506 = scalar_lea.vmem [#allocation8], 64
          %v507 = vld [vmem:[%s506] sm:$0xff]
          %v508 = vld [vmem:[%s506 + $0x8] sm:$0xff]
          %v509 = vld [vmem:[%s506 + $0x10] sm:$0xff]
          %v510 = vld [vmem:[%s506 + $0x18] sm:$0xff]
          %v511 = vld [vmem:[%s506 + $0x20] sm:$0xff]
          %v512 = vld [vmem:[%s506 + $0x28] sm:$0xff]
          %v513 = vld [vmem:[%s506 + $0x30] sm:$0xff]
          %v514 = vld [vmem:[%s506 + $0x38] sm:$0xff]
          %v515 = vperm.slane %v348, 5
          %v517 = vsel %vm390, %v505, 0
          %519 = vmatpush.msra.mxu0 0.0
          %520 = vmatpush.msra.mxu0 0.0
          %521 = vmatpush.msra.mxu0 0.0
          %522 = vmatpush.msra.mxu0 0.0
          %523 = vmatpush.msra.mxu0 0.0
          %524 = vmatpush.msra.mxu0 0.0
          %525 = vmatpush.msra.mxu0 0.0
          %526 = vmatpush.msra.mxu0 0.0
          %527 = vmatpush.msra.mxu0 %v514
          %528 = vmatpush.msra.mxu0 %v513
          %529 = vmatpush.msra.mxu0 %v512
          %530 = vmatpush.msra.mxu0 %v511
          %531 = vmatpush.msra.mxu0 %v510
          %532 = vmatpush.msra.mxu0 %v509
          %533 = vmatpush.msra.mxu0 %v508
          %534 = vmatpush.msra.mxu0 %v507
          %535 = vmatmul.f32.gmra.mxu0 %v517
          %v536 = vpop.f32.mrf.mxu0
          %v537 = vadd.f32 %v515, %v536
          %538 = vdwg.mxu0
          %vm539 = vcmp.ge.f32.partialorder %v537, 0.0
          %v540 = vperm.slane %v349, 0
          %v541 = vmul.f32 %v540, %v537
          %v542 = vsel %vm539, %v537, %v541
          %544 = vrot.lane.b32.xlu0 %v388, 64
          %v545 = vpop.permute.xlu0 %544
          %v547 = vadd.f32 %v542, %v545
          %548 = vst.msk [vmem:[#allocation11] sm:$0xff] %vm390, %v547
        $region64: #{tpu_custom_call.1} parent=39 // pred_fallthru
          _
        // Predicated region
        $region65: #{tpu_custom_call.1} parent=39 // pred_check
          %p549 = pneg %p145
        $region66: #{tpu_custom_call.1} parent=39 // pred_check_branch
          %551 = sbr.rel (%p549) target = $region68
        $region67: #{tpu_custom_call.1} parent=39 // pred_region
          %553 = vsyncadd [#allocation5], 0
          %s555 = sshll.u32 [#allocation11], 4
          %s556 = int_to_ptr.vmem [resolvable:$true] %s555
          %s557 = sshll.u32 %s5, 4
          %s558 = int_to_ptr.hbm [resolvable:$true] %s557
          %560 = dma.vmem_to_hbm [thread:$0]  %s556, 128, %s558, [#allocation5]
        $region68: #{tpu_custom_call.1} parent=39 // pred_fallthru
          _
        // Predicated region
        $region69: #{tpu_custom_call.1} parent=39 // pred_check
          %p561 = pneg %p145
        $region70: #{tpu_custom_call.1} parent=39 // pred_check_branch
          %563 = sbr.rel (%p561) target = $region72
        $region71: #{tpu_custom_call.1} parent=39 // pred_region
          %565 = dma.done [#allocation5], 128
        $region72: #{tpu_custom_call.1} parent=39 // pred_fallthru
          _
      $region40: #{tpu_custom_call.1} parent=5 // pred_fallthru
        _
      %p566 = scmp.le.s32.totalorder 2, %s17
      // Predicated region
      $region73: #{tpu_custom_call.1} parent=5 // pred_check
        %p567 = pneg %p566
      $region74: #{tpu_custom_call.1} parent=5 // pred_check_branch
        %569 = sbr.rel (%p567) target = $region76
      $region75: #{tpu_custom_call.1} parent=5 // pred_region
        %s570 = ssub.s32 %s17, 2
      $region76: #{tpu_custom_call.1} parent=5 // pred_fallthru
        _
    $region6: #{tpu_custom_call.1} parent=1 // loop_footer
      %s21 = sadd.s32 1, %s17
    $region7: #{tpu_custom_call.1} parent=1 // loop_footer_branch
      %16 = sbr.rel target = $region3
    $region8: #{tpu_custom_call.1} parent=1 // loop_exit
      _
    %571 = vsyncpa [#allocation4], 1
    %s572 = scalar_lea.sflag [#allocation4], 1
    %573 = vsyncpa %s572, 1
    %574 = vsyncpa [#allocation7], 1
    %575 = vsyncpa [#allocation10], 1
    %576 = vsyncpa [#allocation5], 1
    %s577 = scalar_lea.sflag [#allocation5], 1
    %578 = vsyncpa %s577, 1

</llo_original>
